<compile_context>
chip_gen: v7x
topology: tpu7x:2x2x1
jax: 0.10.0
libtpu: 0.0.40
codegen_flags: <defaults>
</compile_context>

<pallas_src>
import jax
import jax.numpy as jnp
from jax import lax
from jax.experimental import pallas as pl
from jax.experimental.pallas import tpu as pltpu

IGNORE_INDEX = -100  # PyTorch CrossEntropyLoss default

_LOGITS_VMEM_BUDGET = 24 * 1024 * 1024   # bytes for double-buffered logits tile
_MAX_TILE_N = 512
_VMEM_LIMIT_BYTES = 40 * 1024 * 1024     # < 64 MiB physical on v7x


def _ce_kernel(labels_ref, logits_ref, loss_ref):
    """Per-token cross-entropy for one (tile_n, V) tile of logits."""
    x = logits_ref[...].astype(jnp.float32)            # (tile_n, V)
    lbl = labels_ref[...]                               # (tile_n, 1) int32

    # One shared (x - m) sweep feeds both exp() and the label gather.
    m = jnp.max(x, axis=-1, keepdims=True)              # (tile_n, 1)
    d = x - m                                            # (tile_n, V)
    sum_e = jnp.sum(jnp.exp(d), axis=-1, keepdims=True)  # (tile_n, 1)
    ids = lax.broadcasted_iota(jnp.int32, x.shape, 1)    # (tile_n, V)
    lab_d = jnp.sum(jnp.where(ids == lbl, d, 0.0), axis=-1, keepdims=True)

    valid = lbl != IGNORE_INDEX
    # lse - x[label] = (m + log(sum_e)) - (lab_d + m) = log(sum_e) - lab_d
    # Invalid / padded / out-of-bounds rows are forced to 0 here (jnp.where
    # does not propagate NaN/Inf from the unselected branch).
    loss_ref[...] = jnp.where(valid, jnp.log(sum_e) - lab_d, 0.0)


def _round_up(x, m):
    return (x + m - 1) // m * m


@jax.jit
def gpt_lm_loss(logits, labels):
    """Shifted LM cross-entropy (mean over valid tokens, ignore_index=-100)."""
    B, S, V = logits.shape
    N = B * S

    # Next-token targets: target[b, s] = labels[b, s+1]; last position ignored.
    tgt = jnp.concatenate(
        [labels[:, 1:].astype(jnp.int32),
         jnp.full((B, 1), IGNORE_INDEX, jnp.int32)], axis=1).reshape(N)

    # Free (contiguous) reshape: no HBM copy of the logits.
    logits2d = logits.reshape(N, V)

    # Token-tile sizing: fill the VMEM budget (double-buffered), cap at 512,
    # never exceed the (8-rounded) number of tokens, keep a multiple of 8.
    itemsize = jnp.dtype(logits.dtype).itemsize
    tile_n = _LOGITS_VMEM_BUDGET // (2 * V * itemsize)
    tile_n = min(tile_n, _MAX_TILE_N, _round_up(N, 8))
    tile_n = max(8, (tile_n // 8) * 8)
    # TODO(synk): for very large vocab (> ~400k f32) add a vocab grid axis with
    # an online logsumexp instead of shrinking tile_n further.

    grid_n = (N + tile_n - 1) // tile_n
    n_pad_tokens = grid_n * tile_n
    if n_pad_tokens > N:
        # Pad only the tiny label array; the logits' ragged tail rows are read
        # as an edge block and masked out via the IGNORE_INDEX labels.
        tgt = jnp.concatenate(
            [tgt, jnp.full((n_pad_tokens - N,), IGNORE_INDEX, jnp.int32)])
    tgt_col = tgt.reshape(n_pad_tokens, 1)

    per_tok = pl.pallas_call(
        _ce_kernel,
        out_shape=jax.ShapeDtypeStruct((n_pad_tokens, 1), jnp.float32),
        grid_spec=pltpu.PrefetchScalarGridSpec(
            num_scalar_prefetch=0,
            grid=(grid_n,),
            in_specs=[
                pl.BlockSpec((tile_n, 1), lambda i: (i, 0)),   # shifted labels
                pl.BlockSpec((tile_n, V), lambda i: (i, 0)),   # logits tile
            ],
            out_specs=pl.BlockSpec((tile_n, 1), lambda i: (i, 0)),
        ),
        compiler_params=pltpu.CompilerParams(
            dimension_semantics=("parallel",),
            vmem_limit_bytes=_VMEM_LIMIT_BYTES),
    )(tgt_col, logits2d)

    valid_cnt = jnp.sum(tgt != IGNORE_INDEX).astype(jnp.float32)
    # NOTE: if every label is ignored, this returns NaN — same as PyTorch.
    return jnp.sum(per_tok) / valid_cnt


if __name__ == "__main__":
    key = jax.random.PRNGKey(0)
    B, S, V = 2, 8, 128  # small shapes: batch=2, seq=8, vocab=128
    k1, k2 = jax.random.split(key)
    logits = jax.random.normal(k1, (B, S, V), dtype=jnp.float32)
    labels = jax.random.randint(k2, (B, S), 0, V, dtype=jnp.int32)

    loss = gpt_lm_loss(logits, labels)
    jax.block_until_ready(loss)

    # sanity check against a pure-JAX reference of the same semantics
    ref_logits = logits[:, :-1, :].reshape(-1, V)
    ref_labels = labels[:, 1:].reshape(-1)
    ref_lse = jax.nn.logsumexp(ref_logits, axis=-1)
    ref_lab = jnp.take_along_axis(ref_logits, ref_labels[:, None], axis=-1)[:, 0]
    ref_loss = jnp.mean(ref_lse - ref_lab)
    assert jnp.allclose(loss, ref_loss, rtol=1e-5, atol=1e-5), (loss, ref_loss)

    print("KERNEL_OK")
</pallas_src>

<mosaic_0001>
module attributes {stable_mosaic.version = 11 : i64} {
  func.func @_ce_kernel(%arg0: i32, %arg1: memref<16x1xi32, #tpu.memory_space<vmem>>, %arg2: memref<16x128xf32, #tpu.memory_space<vmem>>, %arg3: memref<16x1xf32, #tpu.memory_space<vmem>>) attributes {dimension_semantics = [#tpu.dimension_semantics<parallel>], iteration_bounds = array<i64: 1>, scalar_prefetch = 0 : i64, scratch_operands = 0 : i64, tpu.core_type = #tpu.core_type<tc>, window_params = [{transform_indices = @transform_0, window_bounds = array<i64: 16, 1>}, {transform_indices = @transform_1, window_bounds = array<i64: 16, 128>}, {transform_indices = @transform_2, window_bounds = array<i64: 16, 1>}]} {
    %c0 = arith.constant 0 : index
    %c0_0 = arith.constant 0 : index
    %0 = vector.load %arg2[%c0, %c0_0] : memref<16x128xf32, #tpu.memory_space<vmem>>, vector<16x128xf32>
    %c0_1 = arith.constant 0 : index
    %c0_2 = arith.constant 0 : index
    %1 = vector.load %arg1[%c0_1, %c0_2] : memref<16x1xi32, #tpu.memory_space<vmem>>, vector<16x1xi32>
    %cst = arith.constant dense<0xFF800000> : vector<16xf32>
    %2 = vector.multi_reduction <maximumf>, %0, %cst [1] : vector<16x128xf32> to vector<16xf32>
    %3 = vector.shape_cast %2 : vector<16xf32> to vector<16x1xf32>
    %4 = vector.broadcast %3 : vector<16x1xf32> to vector<16x128xf32>
    %5 = arith.subf %0, %4 : vector<16x128xf32>
    %6 = math.exp %5 : vector<16x128xf32>
    %cst_3 = arith.constant dense<0.000000e+00> : vector<16xf32>
    %7 = vector.multi_reduction <add>, %6, %cst_3 [1] : vector<16x128xf32> to vector<16xf32>
    %8 = vector.shape_cast %7 : vector<16xf32> to vector<16x1xf32>
    %9 = tpu.iota {dimensions = array<i32: 1>} : vector<16x128xi32>
    %10 = vector.broadcast %1 : vector<16x1xi32> to vector<16x128xi32>
    %11 = arith.cmpi eq, %9, %10 : vector<16x128xi32>
    %cst_4 = arith.constant 0.000000e+00 : f32
    %12 = vector.broadcast %cst_4 : f32 to vector<16x128xf32>
    %13 = arith.select %11, %5, %12 : vector<16x128xi1>, vector<16x128xf32>
    %cst_5 = arith.constant dense<0.000000e+00> : vector<16xf32>
    %14 = vector.multi_reduction <add>, %13, %cst_5 [1] : vector<16x128xf32> to vector<16xf32>
    %15 = vector.shape_cast %14 : vector<16xf32> to vector<16x1xf32>
    %c-100_i32 = arith.constant -100 : i32
    %16 = vector.broadcast %c-100_i32 : i32 to vector<16x1xi32>
    %17 = arith.cmpi ne, %1, %16 : vector<16x1xi32>
    %18 = math.log %8 : vector<16x1xf32>
    %19 = arith.subf %18, %15 : vector<16x1xf32>
    %cst_6 = arith.constant 0.000000e+00 : f32
    %20 = vector.broadcast %cst_6 : f32 to vector<16x1xf32>
    %21 = arith.select %17, %19, %20 : vector<16x1xi1>, vector<16x1xf32>
    %c0_7 = arith.constant 0 : index
    %c0_8 = arith.constant 0 : index
    %22 = vector.load %arg3[%c0_7, %c0_8] : memref<16x1xf32, #tpu.memory_space<vmem>>, vector<16x1xf32>
    tpu.vector_store %arg3[%c0_7, %c0_8], %21 {strides = array<i32>} : memref<16x1xf32, #tpu.memory_space<vmem>>, vector<16x1xf32>,
    return
  }
  func.func @transform_0(%arg0: i32) -> (i32, i32) {
    %c0_i32 = arith.constant 0 : i32
    %c0_i32_0 = arith.constant 0 : i32
    return %arg0, %c0_i32 : i32, i32
  }
  func.func @transform_1(%arg0: i32) -> (i32, i32) {
    %c0_i32 = arith.constant 0 : i32
    %c0_i32_0 = arith.constant 0 : i32
    return %arg0, %c0_i32 : i32, i32
  }
  func.func @transform_2(%arg0: i32) -> (i32, i32) {
    %c0_i32 = arith.constant 0 : i32
    %c0_i32_0 = arith.constant 0 : i32
    return %arg0, %c0_i32 : i32, i32
  }
}

</mosaic_0001>

<llo_original>
// kernel: gpt_lm_loss.1
$region0: #{gpt_lm_loss.1}
  #allocation0 [shape = 'u32[]', space=smem, size = 0x4, offset = 0x4, fixed_abs, tag = 'smem constant byte address 0x4 - core index']
  #allocation1 [shape = 'u32[144,128]{1,0:T(1,128)}', space=vmem, size = 0x12000, scoped, tag = 'internal scratch']
  %s0 = inlined_call_operand.vmem [shape: s32[16,1], index: 0, kind: input, shape index: {}]
  %s1 = inlined_call_operand.vmem [shape: f32[16,128], index: 1, kind: input, shape index: {}]
  %s2 = inlined_call_operand.vmem [shape: f32[16,1], index: 2, kind: output, shape index: {}]
  %s3 = sld [smem:[#allocation0]]
  $region18: #{gpt_lm_loss.1} parent=0
    _
  %s5 = ssub.s32 1, %s3
  %s6 = scalar_select 0, %s5, %s3
  // Predicated region
  $region2: #{gpt_lm_loss.1} parent=0 // pred_check
    _
  $region3: #{gpt_lm_loss.1} parent=0 // pred_check_branch
    %8 = sbr.rel (0) target = $region5
  $region4: #{gpt_lm_loss.1} parent=0 // pred_region
    _
  $region5: #{gpt_lm_loss.1} parent=0 // pred_fallthru
    _
  // Predicated region
  $region6: #{gpt_lm_loss.1} parent=0 // pred_check
    _
  $region7: #{gpt_lm_loss.1} parent=0 // pred_check_branch
    %10 = sbr.rel (0) target = $region9
  $region8: #{gpt_lm_loss.1} parent=0 // pred_region
    _
  $region9: #{gpt_lm_loss.1} parent=0 // pred_fallthru
    _
  %v11 = vld [vmem:[%s1] sm:$0xff]
  %v12 = vld [vmem:[%s1 + $0x8] sm:$0xff]
  %v13 = vld [vmem:[%s0] sm:$0xff]
  %v14 = vld [vmem:[%s0 + $0x8] sm:$0xff]
  %15 = vmax.xlane.f32.xlu0 %v11
  %v16 = vpop.xlane.xlu0 %15
  %17 = vmax.xlane.f32.xlu0 %v12
  %v18 = vpop.xlane.xlu0 %17
  %v19 = vsub.f32 %v11, %v16
  %v20 = vsub.f32 %v12, %v18
  %v21 = vmul.f32 %v19, 1.442695
  %v22 = vpow.pop %v21
  %v23 = vmul.f32 %v20, 1.442695
  %v24 = vpow.pop %v23
  %25 = vadd.xlane.f32.xlu0 %v22
  %v26 = vpop.xlane.xlu0 %25
  %27 = vadd.xlane.f32.xlu0 %v24
  %v28 = vpop.xlane.xlu0 %27
  %v29 = vlaneseq
  %v30 = vand.u32 %v29, 127
  %31 = vset.pattern.permute.xlu0 0
  %32 = vperm.xlu0 %31, %v13
  %v33 = vpop.permute.xlu0 %32
  %34 = vset.pattern.permute.xlu0 0
  %35 = vperm.xlu0 %34, %v14
  %v36 = vpop.permute.xlu0 %35
  %vm37 = vcmp.eq.s32.totalorder %v30, %v33
  %vm38 = vcmp.eq.s32.totalorder %v30, %v36
  %v39 = vsel %vm37, %v19, 0.0
  %v40 = vsel %vm38, %v20, 0.0
  %41 = vadd.xlane.f32.xlu0 %v39
  %v42 = vpop.xlane.xlu0 %41
  %43 = vadd.xlane.f32.xlu0 %v40
  %v44 = vpop.xlane.xlu0 %43
  %vm45 = vcmp.ne.s32.totalorder %v13, 4294967196
  %vm46 = vcmp.ne.s32.totalorder %v14, 4294967196
  %v47 = vlog2.pop %v26
  %v48 = vmul.f32 %v47, 0.6931472
  %v49 = vlog2.pop %v28
  %v50 = vmul.f32 %v49, 0.6931472
  %v51 = vsub.f32 %v48, %v42
  %v52 = vsub.f32 %v50, %v44
  %v53 = vsel %vm45, %v51, 0.0
  %v54 = vsel %vm46, %v52, 0.0
  %vm55 = vcmask 7168
  %56 = vst.msk [vmem:[%s2] sm:$0xff] %vm55, %v53
  %57 = vst.msk [vmem:[%s2 + $0x8] sm:$0xff] %vm55, %v54
  // Predicated region
  $region10: #{gpt_lm_loss.1} parent=0 // pred_check
    _
  $region11: #{gpt_lm_loss.1} parent=0 // pred_check_branch
    %59 = sbr.rel (0) target = $region13
  $region12: #{gpt_lm_loss.1} parent=0 // pred_region
    _
  $region13: #{gpt_lm_loss.1} parent=0 // pred_fallthru
    _
  // Predicated region
  $region14: #{gpt_lm_loss.1} parent=0 // pred_check
    _
  $region15: #{gpt_lm_loss.1} parent=0 // pred_check_branch
    %61 = sbr.rel (0) target = $region17
  $region16: #{gpt_lm_loss.1} parent=0 // pred_region
    _
  $region17: #{gpt_lm_loss.1} parent=0 // pred_fallthru
    _

</llo_original>
